<compile_context>
chip_gen: v6e
topology: v6e:2x2x1
jax: 0.10.0
libtpu: 0.0.40
codegen_flags: <defaults>
</compile_context>

<pallas_src>
import jax
import jax.numpy as jnp
from jax.experimental import pallas as pl
from jax.experimental.pallas import tpu as pltpu


def _round_up(x, m):
    return (x + m - 1) // m * m


# --------------------------------- kernel -----------------------------------

def dense_layer_kernel(x_ref, w_ref, b_ref, o_ref, acc_ref):
    """One (tm, tn) tile of relu(x @ W_t + b); K is the innermost grid axis."""
    k = pl.program_id(2)

    @pl.when(k == 0)
    def _():
        acc_ref[...] = jnp.zeros_like(acc_ref)

    # x streams in its caller dtype (f32) and is cast to the MXU compute dtype
    # (bf16) on the VPU here -- the cast rides a free VALU slot and avoids a
    # separate wrapper-side cast pass over x in HBM.
    x_tile = x_ref[...].astype(w_ref.dtype)
    acc_ref[...] += jnp.dot(x_tile, w_ref[...],
                            preferred_element_type=jnp.float32)

    @pl.when(k == pl.num_programs(2) - 1)
    def _():
        y = acc_ref[...] + b_ref[...].astype(jnp.float32)      # fused bias add (f32)
        o_ref[...] = jnp.maximum(y, 0.0).astype(o_ref.dtype)   # fused ReLU + cast


# --------------------------------- wrapper ----------------------------------

def prepare_dense_params(weight, bias, compute_dtype=jnp.bfloat16):
    """Init-time parameter prep (done once per layer, never on the hot path).

    weight: (out, in) as stored by nn.Linear -> (in, out), cast to the MXU
    compute dtype.  bias -> (1, out) float32 row (added in f32 in the kernel).
    """
    w_t = jnp.asarray(weight).T.astype(compute_dtype)             # (K, N)
    b_row = jnp.asarray(bias).reshape(1, -1).astype(jnp.float32)  # (1, N)
    return w_t, b_row


def _select_tiles(m, n, k, tm, tn, max_tk):
    # K (reduction axis): never allow a partial block -- OOB garbage on K would
    # be accumulated into valid outputs.  Prefer a single full-K step.
    if k <= max_tk:
        tk, kp = k, k
    else:
        tk = 0
        for cand in range(max_tk, 127, -128):
            if k % cand == 0:
                tk = cand
                break
        if tk:
            kp = k
        else:
            tk, kp = max_tk, _round_up(k, max_tk)   # rare: needs K padding

    # M tile: full extent if one block suffices, else sublane-aligned (x8);
    # a partial trailing M block only feeds output rows that are masked off.
    tm = m if m <= tm else max(8, (tm // 8) * 8)

    # N tile: full extent if one block suffices, else lane-aligned (x128).
    tn = n if n <= tn else max(128, (tn // 128) * 128)

    # Megacore (v7x has 2 TensorCores): if M collapses to a single block,
    # split N into >=2 blocks so the second core is not idle.
    if -(-m // tm) == 1 and n >= 256:
        tn = min(tn, _round_up(-(-n // 2), 128))

    return tm, tn, tk, kp


def dense_layer(x, w_t, b_row, *, tm=512, tn=512, max_tk=2048):
    """relu(x @ w_t + b_row).  x: (..., in), w_t: (in, out), b_row: (1, out)."""
    *lead, k = x.shape
    k_w, n = w_t.shape
    assert k == k_w, (k, k_w)
    x2 = x.reshape(-1, k)
    m = x2.shape[0]
    out_dtype = x.dtype

    tm, tn, tk, kp = _select_tiles(m, n, k, tm, tn, max_tk)

    if kp != k:
        # TODO(synk): rare fallback (huge K with no 128-aligned divisor); fold the
        # static weight K-padding into prepare_dense_params instead.
        x2 = jnp.pad(x2, ((0, 0), (0, kp - k)))
        w_t = jnp.pad(w_t, ((0, kp - k), (0, 0)))

    grid = (pl.cdiv(m, tm), pl.cdiv(n, tn), kp // tk)
    grid_m, grid_n, _ = grid

    # Generation-aware VMEM budget (v5e/v6e: 128 MiB physical, v7x: 64 MiB).
    try:
        vmem_cap = (3 * int(pltpu.get_tpu_info().vmem_capacity_bytes)) // 4
    except Exception:
        vmem_cap = 48 << 20                      # conservative v7x-safe default
    working_set = (
        2 * tm * tk * x2.dtype.itemsize          # x tiles (double-buffered)
        + 2 * tk * tn * w_t.dtype.itemsize       # weight tiles
        + 2 * tn * b_row.dtype.itemsize          # bias tiles
        + 2 * tm * tn * jnp.dtype(out_dtype).itemsize   # output tiles
        + tm * tn * 4)                           # f32 accumulator scratch
    vmem_limit = int(min(max(2 * working_set, 16 << 20), vmem_cap))

    # HBM traffic hint reflecting tiled re-streaming: weight is read grid_m
    # times, x is read grid_n times, output is written once.
    cost = pl.CostEstimate(
        flops=2 * m * kp * n,
        transcendentals=0,
        bytes_accessed=(grid_n * m * kp * x2.dtype.itemsize
                        + grid_m * kp * n * w_t.dtype.itemsize
                        + grid_m * n * b_row.dtype.itemsize
                        + m * n * jnp.dtype(out_dtype).itemsize),
    )

    out = pl.pallas_call(
        dense_layer_kernel,
        out_shape=jax.ShapeDtypeStruct((m, n), out_dtype),
        grid_spec=pltpu.PrefetchScalarGridSpec(
            num_scalar_prefetch=0,
            grid=grid,
            in_specs=[
                pl.BlockSpec((tm, tk), lambda i, j, kk: (i, kk)),   # x tile
                # Weight already stored (in, out): plain row-major stream, no
                # in-kernel transpose.  If a trace ever shows exposed DMA on
                # this stream, bump it to pipeline_mode=pl.Buffered(3).
                pl.BlockSpec((tk, tn), lambda i, j, kk: (kk, j)),   # weight tile
                pl.BlockSpec((1, tn), lambda i, j, kk: (0, j)),     # bias tile
            ],
            out_specs=pl.BlockSpec((tm, tn), lambda i, j, kk: (i, j)),
            scratch_shapes=[pltpu.VMEM((tm, tn), jnp.float32)],
        ),
        compiler_params=pltpu.CompilerParams(
            dimension_semantics=("parallel", "parallel", "arbitrary"),
            vmem_limit_bytes=vmem_limit,
        ),
        cost_estimate=cost,
    )(x2, w_t, b_row)

    return out.reshape(*lead, n)


# ------------------------------- reference ----------------------------------

def _ref(x, w_t, b_row):
    """Pure-JAX reference using the same bf16-operand / f32-accumulate path."""
    y = jnp.dot(x.astype(w_t.dtype), w_t, preferred_element_type=jnp.float32)
    return jnp.maximum(y + b_row, 0.0).astype(x.dtype)


if __name__ == "__main__":
    key = jax.random.PRNGKey(0)
    kx, kw, kb, k2x, k2w, k2b = jax.random.split(key, 6)

    # --- Small shapes matching DenseLayer.forward: x (batch, in_channels). ---
    batch, in_channels, out_channels = 8, 32, 64
    bound = 1.0 / jnp.sqrt(jnp.float32(in_channels))
    weight = jax.random.uniform(kw, (out_channels, in_channels),
                                minval=-bound, maxval=bound, dtype=jnp.float32)
    bias = jax.random.uniform(kb, (out_channels,),
                              minval=-bound, maxval=bound, dtype=jnp.float32)
    x = jax.random.normal(kx, (batch, in_channels), dtype=jnp.float32)

    w_t, b_row = prepare_dense_params(weight, bias)        # init-time prep
    out = jax.block_until_ready(dense_layer(x, w_t, b_row))
    assert out.shape == (batch, out_channels)
    assert jnp.allclose(out, _ref(x, w_t, b_row), atol=1e-2, rtol=1e-2)

    # --- Larger case A: default tiles -> grid (1, 2, 1). Exercises the
    #     megacore N-split and a ragged trailing N block (320 = 256 + 64). ---
    m2, k2, n2 = 384, 1024, 320
    bound2 = 1.0 / jnp.sqrt(jnp.float32(k2))
    w2 = jax.random.uniform(k2w, (n2, k2), minval=-bound2, maxval=bound2,
                            dtype=jnp.float32)
    b2 = jax.random.uniform(k2b, (n2,), minval=-bound2, maxval=bound2,
                            dtype=jnp.float32)
    x2 = jax.random.normal(k2x, (m2, k2), dtype=jnp.float32)

    w2_t, b2_row = prepare_dense_params(w2, b2)
    ref2 = _ref(x2, w2_t, b2_row)

    out2a = jax.block_until_ready(dense_layer(x2, w2_t, b2_row))
    assert out2a.shape == (m2, n2)
    assert jnp.allclose(out2a, ref2, atol=2e-2, rtol=2e-2)

    # --- Larger case B: tm=256, max_tk=512 -> grid (2, 1, 2). Exercises the
    #     multi-step K accumulation (init/finalize) and a ragged M block. ---
    out2b = jax.block_until_ready(dense_layer(x2, w2_t, b2_row, tm=256, max_tk=512))
    assert out2b.shape == (m2, n2)
    assert jnp.allclose(out2b, ref2, atol=2e-2, rtol=2e-2)

    print("KERNEL_OK")
</pallas_src>

<mosaic_0001>
module attributes {stable_mosaic.version = 11 : i64} {
  func.func @dense_layer_kernel(%arg0: i32, %arg1: i32, %arg2: i32, %arg3: memref<8x32xf32, #tpu.memory_space<vmem>>, %arg4: memref<32x64xbf16, #tpu.memory_space<vmem>>, %arg5: memref<1x64xf32, #tpu.memory_space<vmem>>, %arg6: memref<8x64xf32, #tpu.memory_space<vmem>>, %arg7: memref<8x64xf32, #tpu.memory_space<vmem>>) attributes {dimension_semantics = [#tpu.dimension_semantics<parallel>, #tpu.dimension_semantics<parallel>, #tpu.dimension_semantics<arbitrary>], iteration_bounds = array<i64: 1, 1, 1>, scalar_prefetch = 0 : i64, scratch_operands = 1 : i64, tpu.core_type = #tpu.core_type<tc>, window_params = [{transform_indices = @transform_0, window_bounds = array<i64: 8, 32>}, {transform_indices = @transform_1, window_bounds = array<i64: 32, 64>}, {transform_indices = @transform_2, window_bounds = array<i64: 1, 64>}, {transform_indices = @transform_3, window_bounds = array<i64: 8, 64>}]} {
    %c0_i32 = arith.constant 0 : i32
    %0 = arith.cmpi eq, %arg2, %c0_i32 : i32
    %1 = arith.extui %0 : i1 to i32
    %c0_i32_0 = arith.constant 0 : i32
    %2 = arith.cmpi ne, %1, %c0_i32_0 : i32
    scf.if %2 {
      %cst_10 = arith.constant 0.000000e+00 : f32
      %13 = vector.broadcast %cst_10 : f32 to vector<8x64xf32>
      %c0_11 = arith.constant 0 : index
      %c0_12 = arith.constant 0 : index
      %14 = vector.load %arg7[%c0_11, %c0_12] : memref<8x64xf32, #tpu.memory_space<vmem>>, vector<8x64xf32>
      tpu.vector_store %arg7[%c0_11, %c0_12], %13 {strides = array<i32>} : memref<8x64xf32, #tpu.memory_space<vmem>>, vector<8x64xf32>,
    } else {
    }
    %c0 = arith.constant 0 : index
    %c0_1 = arith.constant 0 : index
    %3 = vector.load %arg3[%c0, %c0_1] : memref<8x32xf32, #tpu.memory_space<vmem>>, vector<8x32xf32>
    %4 = arith.truncf %3 : vector<8x32xf32> to vector<8x32xbf16>
    %c0_2 = arith.constant 0 : index
    %c0_3 = arith.constant 0 : index
    %5 = vector.load %arg7[%c0_2, %c0_3] : memref<8x64xf32, #tpu.memory_space<vmem>>, vector<8x64xf32>
    %c0_4 = arith.constant 0 : index
    %c0_5 = arith.constant 0 : index
    %6 = vector.load %arg4[%c0_4, %c0_5] : memref<32x64xbf16, #tpu.memory_space<vmem>>, vector<32x64xbf16>
    %cst = arith.constant dense<0.000000e+00> : vector<8x64xf32>
    %7 = tpu.matmul %4, %6, %cst {dimension_numbers = #tpu.dot_dimension_numbers<[1], [0], [0], [1], [0, 0, 1, 1], [], []>} : vector<8x32xbf16>, vector<32x64xbf16>, vector<8x64xf32> -> vector<8x64xf32>
    %8 = arith.addf %5, %7 : vector<8x64xf32>
    %c0_6 = arith.constant 0 : index
    %c0_7 = arith.constant 0 : index
    %9 = vector.load %arg7[%c0_6, %c0_7] : memref<8x64xf32, #tpu.memory_space<vmem>>, vector<8x64xf32>
    tpu.vector_store %arg7[%c0_6, %c0_7], %8 {strides = array<i32>} : memref<8x64xf32, #tpu.memory_space<vmem>>, vector<8x64xf32>,
    %c0_i32_8 = arith.constant 0 : i32
    %10 = arith.cmpi eq, %arg2, %c0_i32_8 : i32
    %11 = arith.extui %10 : i1 to i32
    %c0_i32_9 = arith.constant 0 : i32
    %12 = arith.cmpi ne, %11, %c0_i32_9 : i32
    scf.if %12 {
      %c0_10 = arith.constant 0 : index
      %c0_11 = arith.constant 0 : index
      %13 = vector.load %arg7[%c0_10, %c0_11] : memref<8x64xf32, #tpu.memory_space<vmem>>, vector<8x64xf32>
      %c0_12 = arith.constant 0 : index
      %c0_13 = arith.constant 0 : index
      %14 = vector.load %arg5[%c0_12, %c0_13] : memref<1x64xf32, #tpu.memory_space<vmem>>, vector<1x64xf32>
      %15 = vector.broadcast %14 : vector<1x64xf32> to vector<8x64xf32>
      %16 = arith.addf %13, %15 : vector<8x64xf32>
      %cst_14 = arith.constant 0.000000e+00 : f32
      %17 = vector.broadcast %cst_14 : f32 to vector<8x64xf32>
      %18 = arith.maximumf %16, %17 : vector<8x64xf32>
      %c0_15 = arith.constant 0 : index
      %c0_16 = arith.constant 0 : index
      %19 = vector.load %arg6[%c0_15, %c0_16] : memref<8x64xf32, #tpu.memory_space<vmem>>, vector<8x64xf32>
      tpu.vector_store %arg6[%c0_15, %c0_16], %18 {strides = array<i32>} : memref<8x64xf32, #tpu.memory_space<vmem>>, vector<8x64xf32>,
    } else {
    }
    return
  }
  func.func @transform_0(%arg0: i32, %arg1: i32, %arg2: i32) -> (i32, i32) {
    %c0_i32 = arith.constant 0 : i32
    return %arg0, %arg2 : i32, i32
  }
  func.func @transform_1(%arg0: i32, %arg1: i32, %arg2: i32) -> (i32, i32) {
    %c0_i32 = arith.constant 0 : i32
    return %arg2, %arg1 : i32, i32
  }
  func.func @transform_2(%arg0: i32, %arg1: i32, %arg2: i32) -> (i32, i32) {
    %c0_i32 = arith.constant 0 : i32
    %c0_i32_0 = arith.constant 0 : i32
    return %c0_i32, %arg1 : i32, i32
  }
  func.func @transform_3(%arg0: i32, %arg1: i32, %arg2: i32) -> (i32, i32) {
    %c0_i32 = arith.constant 0 : i32
    return %arg0, %arg1 : i32, i32
  }
}

</mosaic_0001>

<llo_original>
// kernel: tpu_custom_call.1
$region0: #{tpu_custom_call.1}
  #allocation0 [shape = 'u32[]', space=smem, size = 0x4, offset = 0x4, fixed_abs, tag = 'smem constant byte address 0x4 - core index']
  #allocation1 [shape = 'u32[144,128]{1,0:T(1,128)}', space=vmem, size = 0x12000, scoped, tag = 'internal scratch']
  #allocation2 [shape = 'f32[8,64]{1,0:T(8,128)}', space=vmem, size = 0x1000, scoped, tag = 'scratch operand']
  %s0 = inlined_call_operand.hbm [shape: f32[8,32], index: 0, kind: input, shape index: {}]
  %s1 = inlined_call_operand.hbm [shape: bf16[32,64], index: 1, kind: input, shape index: {}]
  %s2 = inlined_call_operand.vmem [shape: f32[1,64], index: 2, kind: input, shape index: {}]
  %s3 = inlined_call_operand.hbm [shape: f32[8,64], index: 3, kind: output, shape index: {}]
  %s4 = sld [smem:[#allocation0]]
  $region38: #{tpu_custom_call.1} parent=0
    _
  %s6 = ssub.s32 1, %s4
  %s7 = scalar_select 0, %s6, %s4
  $region1: #{tpu_custom_call.1} parent=0
    #allocation3 [shape = 'u8[4096]{0}', space=vmem, size = 0x1000, scoped, tag = 'input window, operand 0, single buffered']
    #allocation4 [shape = 's32[1]{0}', space=sflag, size = 0x4, scoped, tag = 'scoped memory for tpu_custom_call.1']
    #allocation5 [shape = 's32[1]{0}', space=sflag, size = 0x4, scoped, tag = 'scoped memory for tpu_custom_call.1']
    #allocation6 [shape = 'u8[8192]{0}', space=vmem, size = 0x2000, scoped, tag = 'input window, operand 1, single buffered']
    #allocation7 [shape = 's32[1]{0}', space=sflag, size = 0x4, scoped, tag = 'scoped memory for tpu_custom_call.1']
    #allocation8 [shape = 'u8[4096]{0}', space=vmem, size = 0x1000, scoped, tag = 'output window, operand 0, single buffered']
    %8 = vsyncpa [#allocation4], 0
    %9 = vsyncpa [#allocation7], 0
    %10 = vsyncpa [#allocation5], 0
    // Predicated region
    $region2: #{tpu_custom_call.1} parent=1 // pred_check
      _
    $region3: #{tpu_custom_call.1} parent=1 // pred_check_branch
      %12 = sbr.rel (0) target = $region5
    $region4: #{tpu_custom_call.1} parent=1 // pred_region
      %s14 = ssub.s32 128, 128
      %15 = vsyncadd [#allocation4], %s14
      %s17 = sshll.u32 [#allocation3], 4
      %s18 = int_to_ptr.vmem [resolvable:$true] %s17
      %20 = dma.hbm_to_vmem [thread:$0]  %s0, 128, %s18, [#allocation4]
    $region5: #{tpu_custom_call.1} parent=1 // pred_fallthru
      _
    // Predicated region
    $region6: #{tpu_custom_call.1} parent=1 // pred_check
      _
    $region7: #{tpu_custom_call.1} parent=1 // pred_check_branch
      %22 = sbr.rel (0) target = $region9
    $region8: #{tpu_custom_call.1} parent=1 // pred_region
      %s24 = ssub.s32 256, 256
      %25 = vsyncadd [#allocation7], %s24
      %s26 = sshll.u32 [#allocation6], 4
      %s27 = int_to_ptr.vmem [resolvable:$true] %s26
      %32 = dma.hbm_to_vmem [thread:$0]  %s1, 256, %s27, [#allocation7], 64, 64, 4
    $region9: #{tpu_custom_call.1} parent=1 // pred_fallthru
      _
    // Predicated region
    $region10: #{tpu_custom_call.1} parent=1 // pred_check
      _
    $region11: #{tpu_custom_call.1} parent=1 // pred_check_branch
      %34 = sbr.rel (0) target = $region13
    $region12: #{tpu_custom_call.1} parent=1 // pred_region
      _
    $region13: #{tpu_custom_call.1} parent=1 // pred_fallthru
      _
    // Predicated region
    $region14: #{tpu_custom_call.1} parent=1 // pred_check
      _
    $region15: #{tpu_custom_call.1} parent=1 // pred_check_branch
      %36 = sbr.rel (0) target = $region17
    $region16: #{tpu_custom_call.1} parent=1 // pred_region
      %37 = dma.done [#allocation4], 128
    $region17: #{tpu_custom_call.1} parent=1 // pred_fallthru
      _
    // Predicated region
    $region18: #{tpu_custom_call.1} parent=1 // pred_check
      _
    $region19: #{tpu_custom_call.1} parent=1 // pred_check_branch
      %39 = sbr.rel (0) target = $region21
    $region20: #{tpu_custom_call.1} parent=1 // pred_region
      %40 = dma.done [#allocation7], 256
    $region21: #{tpu_custom_call.1} parent=1 // pred_fallthru
      _
    %p42 = scmp.eq.s32.totalorder 0, 0
    // Predicated region
    $region22: #{tpu_custom_call.1} parent=1 // pred_check
      %p43 = pneg %p42
    $region23: #{tpu_custom_call.1} parent=1 // pred_check_branch
      %45 = sbr.rel (%p43) target = $region25
    $region24: #{tpu_custom_call.1} parent=1 // pred_region
      %vm46 = vcmask 523264
      %47 = vst.msk [vmem:[#allocation2] sm:$0xff] %vm46, 0.0
    $region25: #{tpu_custom_call.1} parent=1 // pred_fallthru
      _
    %v48 = vld [vmem:[#allocation3] sm:$0xff]
    %v49 = vpack.c.bf16 %v48, %v48
    %v50 = vld [vmem:[#allocation2] sm:$0xff]
    %v51 = vld [vmem:[#allocation6] sm:$0xf]
    %v52 = vld [vmem:[#allocation6 + $0x4] sm:$0xf]
    %v53 = vld [vmem:[#allocation6 + $0x8] sm:$0xf]
    %v54 = vld [vmem:[#allocation6 + $0xc] sm:$0xf]
    %v59 = vunpack.c.l.b16 %v51
    %v60 = vunpack.c.l.b16 %v52
    %v61 = vunpack.c.l.b16 %v53
    %v62 = vunpack.c.l.b16 %v54
    %v63 = vpack.c.b16 %v60, %v59
    %v64 = vpack.c.b16 %v62, %v61
    %vm67 = vcmask 261120
    %v69 = vsel %vm67, %v49, 0
    %71 = vmatprep.subr.bf16.mxu0 0
    %72 = vmatpush1.bf16.msra.mxu0 0
    %73 = vmatprep.subr.bf16.mxu0 0
    %74 = vmatpush1.bf16.msra.mxu0 0
    %75 = vmatprep.subr.bf16.mxu0 0
    %76 = vmatpush1.bf16.msra.mxu0 0
    %77 = vmatprep.subr.bf16.mxu0 0
    %78 = vmatpush1.bf16.msra.mxu0 0
    %79 = vmatprep.subr.bf16.mxu0 0
    %80 = vmatpush1.bf16.msra.mxu0 0
    %81 = vmatprep.subr.bf16.mxu0 0
    %82 = vmatpush1.bf16.msra.mxu0 0
    %83 = vmatprep.subr.bf16.mxu0 0
    %84 = vmatpush1.bf16.msra.mxu0 %v64
    %85 = vmatprep.subr.bf16.mxu0 0
    %86 = vmatpush1.bf16.msra.mxu0 %v63
    %87 = vmatprep.subr.bf16.mxu0 0
    %88 = vmatpush2.bf16.msra.mxu0 0
    %89 = vmatprep.subr.bf16.mxu0 0
    %90 = vmatpush2.bf16.msra.mxu0 0
    %91 = vmatprep.subr.bf16.mxu0 0
    %92 = vmatpush2.bf16.msra.mxu0 0
    %93 = vmatprep.subr.bf16.mxu0 0
    %94 = vmatpush2.bf16.msra.mxu0 0
    %95 = vmatprep.subr.bf16.mxu0 0
    %96 = vmatpush2.bf16.msra.mxu0 0
    %97 = vmatprep.subr.bf16.mxu0 0
    %98 = vmatpush2.bf16.msra.mxu0 0
    %99 = vmatprep.subr.bf16.mxu0 0
    %100 = vmatpush2.bf16.msra.mxu0 0
    %101 = vmatprep.subr.bf16.mxu0 0
    %102 = vmatpush2.bf16.msra.mxu0 0
    %103 = vmatprep.mubr.bf16.mxu0 0
    %104 = vmatmul.mubr.bf16.gmra.mxu0 %v69
    %v105 = vpop.f32.mrf.mxu0
    %v106 = vadd.f32 0.0, %v105
    %v107 = vpop.f32.mrf.mxu0
    %v108 = vpop.f32.mrf.mxu0
    %v109 = vpop.f32.mrf.mxu0
    %110 = vdwg.mxu0
    %v111 = vadd.f32 %v50, %v106
    %vm112 = vcmask 523264
    %113 = vst.msk [vmem:[#allocation2] sm:$0xff] %vm112, %v111
    // Predicated region
    $region26: #{tpu_custom_call.1} parent=1 // pred_check
      %p114 = pneg %p42
    $region27: #{tpu_custom_call.1} parent=1 // pred_check_branch
      %116 = sbr.rel (%p114) target = $region29
    $region28: #{tpu_custom_call.1} parent=1 // pred_region
      %v117 = vld [vmem:[#allocation2] sm:$0xff]
      %v118 = vld [vmem:[%s2] sm:$0x1]
      %v120 = vlaneseq
      %v121 = vshrl.u32 %v120, 7
      %v122 = vsub.s32 0, %v121
      %v123 = vrot.slane %v118, %v122
      %v125 = vadd.f32 %v117, %v123
      %v126 = vmax.f32 %v125, 0.0
      %127 = vst.msk [vmem:[#allocation8] sm:$0xff] %vm112, %v126
    $region29: #{tpu_custom_call.1} parent=1 // pred_fallthru
      _
    // Predicated region
    $region30: #{tpu_custom_call.1} parent=1 // pred_check
      _
    $region31: #{tpu_custom_call.1} parent=1 // pred_check_branch
      %129 = sbr.rel (0) target = $region33
    $region32: #{tpu_custom_call.1} parent=1 // pred_region
      %s131 = ssub.s32 128, 128
      %132 = vsyncadd [#allocation5], %s131
      %s134 = sshll.u32 [#allocation8], 4
      %s135 = int_to_ptr.vmem [resolvable:$true] %s134
      %137 = dma.vmem_to_hbm [thread:$0]  %s135, 128, %s3, [#allocation5]
    $region33: #{tpu_custom_call.1} parent=1 // pred_fallthru
      _
    // Predicated region
    $region34: #{tpu_custom_call.1} parent=1 // pred_check
      _
    $region35: #{tpu_custom_call.1} parent=1 // pred_check_branch
      %139 = sbr.rel (0) target = $region37
    $region36: #{tpu_custom_call.1} parent=1 // pred_region
      %140 = dma.done [#allocation5], 128
    $region37: #{tpu_custom_call.1} parent=1 // pred_fallthru
      _
    %141 = vsyncpa [#allocation4], 1
    %142 = vsyncpa [#allocation7], 1
    %143 = vsyncpa [#allocation5], 1

</llo_original>
